<compile_context>
chip_gen: v6e
topology: v6e:2x2x1
jax: 0.10.0
libtpu: 0.0.40
codegen_flags: <defaults>
</compile_context>

<pallas_src>
import functools

import jax
import jax.numpy as jnp
from jax.experimental import pallas as pl
from jax.experimental.pallas import tpu as pltpu


def _round_up(x: int, m: int) -> int:
    return ((x + m - 1) // m) * m


def _vmem_capacity_bytes() -> int:
    try:
        return int(pltpu.get_tpu_info().vmem_capacity_bytes)
    except Exception:
        return 64 * 1024 * 1024   # conservative default: v7x per-TC VMEM


def _gcn_kernel(text_ref, adj_ref, inv_ref, w_ref, b_ref, out_ref, *,
                w_first: bool, scale_adj: bool):
    # text_ref: (Bt, N, Fin)  adj_ref: (Bt, N, N)  inv_ref: (Bt, N, 1)
    # w_ref:    (Fin, Fout)   b_ref:   (1, Fout)   out_ref: (Bt, N, Fout)
    bt, n, fin = text_ref.shape
    fout = w_ref.shape[1]

    inv = inv_ref[...]                                   # (Bt, N, 1) f32
    adj = adj_ref[...]                                   # (Bt, N, N)
    if scale_adj:
        # Row-scaling commutes with the aggregation matmul: N*N VPU
        # multiplies instead of N*Fout_pad afterwards.
        adj = adj * inv

    if w_first:
        # hidden = text @ W as one big (Bt*N, Fin) MXU matmul, then aggregate.
        hidden = jnp.dot(
            text_ref[...].reshape(bt * n, fin), w_ref[...],
            preferred_element_type=jnp.float32).reshape(bt, n, fout)
        agg = jnp.einsum("bnm,bmo->bno", adj, hidden.astype(adj.dtype),
                         preferred_element_type=jnp.float32)
    else:
        # Cheaper ordering when Fout_pad > Fin_pad: (adj @ text) @ W.
        at = jnp.einsum("bnm,bmf->bnf", adj, text_ref[...],
                        preferred_element_type=jnp.float32)
        agg = jnp.dot(
            at.astype(w_ref.dtype).reshape(bt * n, fin), w_ref[...],
            preferred_element_type=jnp.float32).reshape(bt, n, fout)

    if not scale_adj:
        agg = agg * inv
    out_ref[...] = (agg + b_ref[...]).astype(out_ref.dtype)


def graph_convolution(text, adj, tree, weight, bias, *,
                      block_b=None, use_bf16=False):
    """Pallas TPU forward of GraphConvolution.

    text: (B, N, Fin), adj/tree: (B, N, N), weight: (Fin, Fout), bias: (Fout,)
    or None.  Returns (B, N, Fout) in text.dtype.
    """
    B, N, Fin = text.shape
    Fout = weight.shape[1]
    out_dtype = text.dtype

    if bias is None:
        bias = jnp.zeros((Fout,), dtype=jnp.float32)

    # Precompute 1/denom in XLA; the NxN `tree` never enters the kernel and no
    # per-step reciprocal work is done on the VPU.
    inv = (1.0 / (jnp.sum(tree, axis=2, keepdims=True) + 1.0)).astype(jnp.float32)

    mm_dtype = jnp.bfloat16 if use_bf16 else jnp.float32
    isz = jnp.dtype(mm_dtype).itemsize
    osz = jnp.dtype(out_dtype).itemsize

    # Padding: N -> multiple of 8 (layout-preserving reshape), Fin -> sublane
    # multiple only (loads tolerate masked lanes), Fout -> 128 (lane-dense,
    # unmasked output stores -- the big measured lever).
    sub = 16 if use_bf16 else 8
    n_p = _round_up(N, 8)
    fin_p = _round_up(Fin, sub)
    fout_p = _round_up(Fout, 128)

    text_p = jnp.pad(text.astype(mm_dtype),
                     ((0, 0), (0, n_p - N), (0, fin_p - Fin)))
    adj_p = jnp.pad(adj.astype(mm_dtype),
                    ((0, 0), (0, n_p - N), (0, n_p - N)))
    inv_p = jnp.pad(inv, ((0, 0), (0, n_p - N), (0, 0)), constant_values=1.0)
    weight_p = jnp.pad(weight.astype(mm_dtype),
                       ((0, fin_p - Fin), (0, fout_p - Fout)))
    bias_p = jnp.pad(bias.astype(jnp.float32),
                     (0, fout_p - Fout)).reshape(1, fout_p)

    # Put the smaller (padded) feature dim into the N^2 aggregation matmul.
    w_first = fout_p <= fin_p
    # Row-scale adj (N-wide) instead of agg (Fout_pad-wide) when cheaper; in
    # the bf16 path keep the scale on the f32 accumulator to avoid rounding.
    scale_adj = (not use_bf16) and (n_p <= fout_p)

    def _block_bytes(bb):
        # Streamed, double-buffered BlockSpec tiles (text, adj, inv, out).
        stream = 2 * bb * n_p * ((fin_p + n_p) * isz + 1 * 4 + fout_p * osz)
        # Grid-invariant weight/bias (assume 2 buffers if Buffered(1) is
        # unavailable at runtime).
        shared = 2 * (fin_p * fout_p * isz + fout_p * 4)
        # Live in-kernel f32 intermediates: hidden/at + agg (+ scaled adj).
        inter = bb * n_p * (max(fin_p, fout_p) + fout_p) * 4
        if scale_adj:
            inter += bb * n_p * n_p * 4
        return stream + shared + inter

    vmem_cap = _vmem_capacity_bytes()
    budget = int(0.70 * vmem_cap)      # ~45 MiB on v7x, ~90 MiB on v5e/v6e

    if block_b is None:
        # Feed the MXU >= 256 rows per step (2x256^2 on v6e/v7x).
        block_b = max(1, min(B, pl.cdiv(256, n_p)))
    if B >= 2:
        # Keep >= 2 grid steps so v7x's two TensorCores both get work.
        block_b = min(block_b, pl.cdiv(B, 2))
    while block_b > 1 and _block_bytes(block_b) > budget:
        block_b = max(1, block_b // 2)

    bp = _round_up(B, block_b)
    if bp != B:
        pad_b = bp - B
        text_p = jnp.pad(text_p, ((0, pad_b), (0, 0), (0, 0)))
        adj_p = jnp.pad(adj_p, ((0, pad_b), (0, 0), (0, 0)))
        inv_p = jnp.pad(inv_p, ((0, pad_b), (0, 0), (0, 0)),
                        constant_values=1.0)

    vmem_limit = int(min(max(_block_bytes(block_b) + (8 << 20), 32 << 20),
                         int(0.85 * vmem_cap)))

    kernel = functools.partial(_gcn_kernel, w_first=w_first,
                               scale_adj=scale_adj)

    def _build(single_buffer_invariants):
        if single_buffer_invariants:
            w_spec = pl.BlockSpec((fin_p, fout_p), lambda b: (0, 0),
                                  pipeline_mode=pl.Buffered(1))
            b_spec = pl.BlockSpec((1, fout_p), lambda b: (0, 0),
                                  pipeline_mode=pl.Buffered(1))
        else:
            w_spec = pl.BlockSpec((fin_p, fout_p), lambda b: (0, 0))
            b_spec = pl.BlockSpec((1, fout_p), lambda b: (0, 0))
        return pl.pallas_call(
            kernel,
            out_shape=jax.ShapeDtypeStruct((bp, n_p, fout_p), out_dtype),
            grid_spec=pltpu.PrefetchScalarGridSpec(
                num_scalar_prefetch=0,
                grid=(bp // block_b,),
                in_specs=[
                    pl.BlockSpec((block_b, n_p, fin_p), lambda b: (b, 0, 0)),
                    pl.BlockSpec((block_b, n_p, n_p), lambda b: (b, 0, 0)),
                    pl.BlockSpec((block_b, n_p, 1), lambda b: (b, 0, 0)),
                    w_spec,
                    b_spec,
                ],
                out_specs=pl.BlockSpec((block_b, n_p, fout_p),
                                       lambda b: (b, 0, 0)),
            ),
            compiler_params=pltpu.CompilerParams(
                dimension_semantics=("parallel",),  # batch axis shards TCs
                vmem_limit_bytes=vmem_limit,
            ),
        )

    args = (text_p, adj_p, inv_p, weight_p, bias_p)
    try:
        out_p = _build(True)(*args)
    except Exception:
        # Some Pallas versions reject single-buffered (Buffered(1)) inputs;
        # fall back to default double-buffering of weight/bias.
        out_p = _build(False)(*args)

    return out_p[:B, :N, :Fout]


def _reference(text, adj, tree, weight, bias):
    hidden = jnp.einsum("bnf,fo->bno", text, weight)
    denom = jnp.sum(tree, axis=2, keepdims=True) + 1.0
    return jnp.einsum("bnm,bmo->bno", adj, hidden) / denom + bias


if __name__ == "__main__":
    # Small, deterministic shapes consistent with the module.
    B, N, Fin, Fout = 2, 16, 32, 32
    key = jax.random.PRNGKey(0)
    k_text, k_adj, k_tree, k_w, k_b = jax.random.split(key, 5)

    text = jax.random.normal(k_text, (B, N, Fin), dtype=jnp.float32)
    adj = jax.random.uniform(k_adj, (B, N, N), dtype=jnp.float32)
    tree = jax.random.uniform(k_tree, (B, N, N), dtype=jnp.float32)

    # Deterministic parameter init (weight (Fin, Fout), bias (Fout,)).
    weight = jax.random.normal(k_w, (Fin, Fout), dtype=jnp.float32) * 0.1
    bias = jax.random.normal(k_b, (Fout,), dtype=jnp.float32) * 0.1

    out = graph_convolution(text, adj, tree, weight, bias)
    jax.block_until_ready(out)

    ref = _reference(text, adj, tree, weight, bias)
    assert out.shape == (B, N, Fout)
    assert jnp.allclose(out, ref, atol=1e-4, rtol=1e-4), "mismatch vs reference"

    print("KERNEL_OK")
</pallas_src>

<mosaic_0001>
module attributes {stable_mosaic.version = 11 : i64} {
  func.func @_gcn_kernel(%arg0: i32, %arg1: memref<1x16x32xf32, #tpu.memory_space<vmem>>, %arg2: memref<1x16x16xf32, #tpu.memory_space<vmem>>, %arg3: memref<1x16x1xf32, #tpu.memory_space<vmem>>, %arg4: memref<32x128xf32, #tpu.memory_space<vmem>>, %arg5: memref<1x128xf32, #tpu.memory_space<vmem>>, %arg6: memref<1x16x128xf32, #tpu.memory_space<vmem>>) attributes {dimension_semantics = [#tpu.dimension_semantics<parallel>], iteration_bounds = array<i64: 2>, scalar_prefetch = 0 : i64, scratch_operands = 0 : i64, tpu.core_type = #tpu.core_type<tc>, window_params = [{transform_indices = @transform_0, window_bounds = array<i64: 1, 16, 32>}, {transform_indices = @transform_1, window_bounds = array<i64: 1, 16, 16>}, {transform_indices = @transform_2, window_bounds = array<i64: 1, 16, 1>}, {pipeline_mode = #tpu.pipeline_mode<synchronous>, transform_indices = @transform_3, window_bounds = array<i64: 32, 128>}, {pipeline_mode = #tpu.pipeline_mode<synchronous>, transform_indices = @transform_4, window_bounds = array<i64: 1, 128>}, {transform_indices = @transform_5, window_bounds = array<i64: 1, 16, 128>}]} {
    %c0 = arith.constant 0 : index
    %c0_0 = arith.constant 0 : index
    %c0_1 = arith.constant 0 : index
    %0 = vector.load %arg3[%c0, %c0_0, %c0_1] : memref<1x16x1xf32, #tpu.memory_space<vmem>>, vector<1x16x1xf32>
    %c0_2 = arith.constant 0 : index
    %c0_3 = arith.constant 0 : index
    %c0_4 = arith.constant 0 : index
    %1 = vector.load %arg2[%c0_2, %c0_3, %c0_4] : memref<1x16x16xf32, #tpu.memory_space<vmem>>, vector<1x16x16xf32>
    %2 = vector.broadcast %0 : vector<1x16x1xf32> to vector<1x16x16xf32>
    %3 = arith.mulf %1, %2 : vector<1x16x16xf32>
    %c0_5 = arith.constant 0 : index
    %c0_6 = arith.constant 0 : index
    %c0_7 = arith.constant 0 : index
    %4 = vector.load %arg1[%c0_5, %c0_6, %c0_7] : memref<1x16x32xf32, #tpu.memory_space<vmem>>, vector<1x16x32xf32>
    "tpu.trace_start"() <{level = 10 : i32, message = "bnm,bmf->bnf"}> : () -> ()
    %cst = arith.constant dense<0.000000e+00> : vector<1x16x32xf32>
    %5 = tpu.matmul %3, %4, %cst {dimension_numbers = #tpu.dot_dimension_numbers<[2], [1], [1], [2], [0, 0, 0, 1, 1, 2], [0], [0]>} : vector<1x16x16xf32>, vector<1x16x32xf32>, vector<1x16x32xf32> -> vector<1x16x32xf32>
    "tpu.trace_stop"() : () -> ()
    %6 = vector.shape_cast %5 : vector<1x16x32xf32> to vector<16x32xf32>
    %c0_8 = arith.constant 0 : index
    %c0_9 = arith.constant 0 : index
    %7 = vector.load %arg4[%c0_8, %c0_9] : memref<32x128xf32, #tpu.memory_space<vmem>>, vector<32x128xf32>
    %cst_10 = arith.constant dense<0.000000e+00> : vector<16x128xf32>
    %8 = tpu.matmul %6, %7, %cst_10 {dimension_numbers = #tpu.dot_dimension_numbers<[1], [0], [0], [1], [0, 0, 1, 1], [], []>} : vector<16x32xf32>, vector<32x128xf32>, vector<16x128xf32> -> vector<16x128xf32>
    %9 = vector.shape_cast %8 : vector<16x128xf32> to vector<1x16x128xf32>
    %c0_11 = arith.constant 0 : index
    %c0_12 = arith.constant 0 : index
    %10 = vector.load %arg5[%c0_11, %c0_12] : memref<1x128xf32, #tpu.memory_space<vmem>>, vector<1x128xf32>
    %11 = vector.shape_cast %10 : vector<1x128xf32> to vector<1x1x128xf32>
    %12 = vector.broadcast %11 : vector<1x1x128xf32> to vector<1x16x128xf32>
    %13 = arith.addf %9, %12 : vector<1x16x128xf32>
    %c0_13 = arith.constant 0 : index
    %c0_14 = arith.constant 0 : index
    %c0_15 = arith.constant 0 : index
    %14 = vector.load %arg6[%c0_13, %c0_14, %c0_15] : memref<1x16x128xf32, #tpu.memory_space<vmem>>, vector<1x16x128xf32>
    tpu.vector_store %arg6[%c0_13, %c0_14, %c0_15], %13 {strides = array<i32>} : memref<1x16x128xf32, #tpu.memory_space<vmem>>, vector<1x16x128xf32>,
    return
  }
  func.func @transform_0(%arg0: i32) -> (i32, i32, i32) {
    %c0_i32 = arith.constant 0 : i32
    %c0_i32_0 = arith.constant 0 : i32
    %c0_i32_1 = arith.constant 0 : i32
    return %arg0, %c0_i32, %c0_i32_0 : i32, i32, i32
  }
  func.func @transform_1(%arg0: i32) -> (i32, i32, i32) {
    %c0_i32 = arith.constant 0 : i32
    %c0_i32_0 = arith.constant 0 : i32
    %c0_i32_1 = arith.constant 0 : i32
    return %arg0, %c0_i32, %c0_i32_0 : i32, i32, i32
  }
  func.func @transform_2(%arg0: i32) -> (i32, i32, i32) {
    %c0_i32 = arith.constant 0 : i32
    %c0_i32_0 = arith.constant 0 : i32
    %c0_i32_1 = arith.constant 0 : i32
    return %arg0, %c0_i32, %c0_i32_0 : i32, i32, i32
  }
  func.func @transform_3(%arg0: i32) -> (i32, i32) {
    %c0_i32 = arith.constant 0 : i32
    %c0_i32_0 = arith.constant 0 : i32
    %c0_i32_1 = arith.constant 0 : i32
    return %c0_i32, %c0_i32_0 : i32, i32
  }
  func.func @transform_4(%arg0: i32) -> (i32, i32) {
    %c0_i32 = arith.constant 0 : i32
    %c0_i32_0 = arith.constant 0 : i32
    %c0_i32_1 = arith.constant 0 : i32
    return %c0_i32, %c0_i32_0 : i32, i32
  }
  func.func @transform_5(%arg0: i32) -> (i32, i32, i32) {
    %c0_i32 = arith.constant 0 : i32
    %c0_i32_0 = arith.constant 0 : i32
    %c0_i32_1 = arith.constant 0 : i32
    return %arg0, %c0_i32, %c0_i32_0 : i32, i32, i32
  }
}

module attributes {stable_mosaic.version = 11 : i64} {
  func.func @_gcn_kernel(%arg0: i32, %arg1: memref<1x16x32xf32, #tpu.memory_space<vmem>>, %arg2: memref<1x16x16xf32, #tpu.memory_space<vmem>>, %arg3: memref<1x16x1xf32, #tpu.memory_space<vmem>>, %arg4: memref<32x128xf32, #tpu.memory_space<vmem>>, %arg5: memref<1x128xf32, #tpu.memory_space<vmem>>, %arg6: memref<1x16x128xf32, #tpu.memory_space<vmem>>) attributes {dimension_semantics = [#tpu.dimension_semantics<parallel>], iteration_bounds = array<i64: 2>, scalar_prefetch = 0 : i64, scratch_operands = 0 : i64, tpu.core_type = #tpu.core_type<tc>, window_params = [{transform_indices = @transform_0, window_bounds = array<i64: 1, 16, 32>}, {transform_indices = @transform_1, window_bounds = array<i64: 1, 16, 16>}, {transform_indices = @transform_2, window_bounds = array<i64: 1, 16, 1>}, {pipeline_mode = #tpu.pipeline_mode<synchronous>, transform_indices = @transform_3, window_bounds = array<i64: 32, 128>}, {pipeline_mode = #tpu.pipeline_mode<synchronous>, transform_indices = @transform_4, window_bounds = array<i64: 1, 128>}, {transform_indices = @transform_5, window_bounds = array<i64: 1, 16, 128>}]} {
    %c0 = arith.constant 0 : index
    %c0_0 = arith.constant 0 : index
    %c0_1 = arith.constant 0 : index
    %0 = vector.load %arg3[%c0, %c0_0, %c0_1] : memref<1x16x1xf32, #tpu.memory_space<vmem>>, vector<1x16x1xf32>
    %c0_2 = arith.constant 0 : index
    %c0_3 = arith.constant 0 : index
    %c0_4 = arith.constant 0 : index
    %1 = vector.load %arg2[%c0_2, %c0_3, %c0_4] : memref<1x16x16xf32, #tpu.memory_space<vmem>>, vector<1x16x16xf32>
    %2 = vector.broadcast %0 : vector<1x16x1xf32> to vector<1x16x16xf32>
    %3 = arith.mulf %1, %2 : vector<1x16x16xf32>
    %c0_5 = arith.constant 0 : index
    %c0_6 = arith.constant 0 : index
    %c0_7 = arith.constant 0 : index
    %4 = vector.load %arg1[%c0_5, %c0_6, %c0_7] : memref<1x16x32xf32, #tpu.memory_space<vmem>>, vector<1x16x32xf32>
    "tpu.trace_start"() <{level = 10 : i32, message = "bnm,bmf->bnf"}> : () -> ()
    %cst = arith.constant dense<0.000000e+00> : vector<1x16x32xf32>
    %5 = tpu.matmul %3, %4, %cst {dimension_numbers = #tpu.dot_dimension_numbers<[2], [1], [1], [2], [0, 0, 0, 1, 1, 2], [0], [0]>} : vector<1x16x16xf32>, vector<1x16x32xf32>, vector<1x16x32xf32> -> vector<1x16x32xf32>
    "tpu.trace_stop"() : () -> ()
    %6 = vector.shape_cast %5 : vector<1x16x32xf32> to vector<16x32xf32>
    %c0_8 = arith.constant 0 : index
    %c0_9 = arith.constant 0 : index
    %7 = vector.load %arg4[%c0_8, %c0_9] : memref<32x128xf32, #tpu.memory_space<vmem>>, vector<32x128xf32>
    %cst_10 = arith.constant dense<0.000000e+00> : vector<16x128xf32>
    %8 = tpu.matmul %6, %7, %cst_10 {dimension_numbers = #tpu.dot_dimension_numbers<[1], [0], [0], [1], [0, 0, 1, 1], [], []>} : vector<16x32xf32>, vector<32x128xf32>, vector<16x128xf32> -> vector<16x128xf32>
    %9 = vector.shape_cast %8 : vector<16x128xf32> to vector<1x16x128xf32>
    %c0_11 = arith.constant 0 : index
    %c0_12 = arith.constant 0 : index
    %10 = vector.load %arg5[%c0_11, %c0_12] : memref<1x128xf32, #tpu.memory_space<vmem>>, vector<1x128xf32>
    %11 = vector.shape_cast %10 : vector<1x128xf32> to vector<1x1x128xf32>
    %12 = vector.broadcast %11 : vector<1x1x128xf32> to vector<1x16x128xf32>
    %13 = arith.addf %9, %12 : vector<1x16x128xf32>
    %c0_13 = arith.constant 0 : index
    %c0_14 = arith.constant 0 : index
    %c0_15 = arith.constant 0 : index
    %14 = vector.load %arg6[%c0_13, %c0_14, %c0_15] : memref<1x16x128xf32, #tpu.memory_space<vmem>>, vector<1x16x128xf32>
    tpu.vector_store %arg6[%c0_13, %c0_14, %c0_15], %13 {strides = array<i32>} : memref<1x16x128xf32, #tpu.memory_space<vmem>>, vector<1x16x128xf32>,
    return
  }
  func.func @transform_0(%arg0: i32) -> (i32, i32, i32) {
    %c0_i32 = arith.constant 0 : i32
    %c0_i32_0 = arith.constant 0 : i32
    %c0_i32_1 = arith.constant 0 : i32
    return %arg0, %c0_i32, %c0_i32_0 : i32, i32, i32
  }
  func.func @transform_1(%arg0: i32) -> (i32, i32, i32) {
    %c0_i32 = arith.constant 0 : i32
    %c0_i32_0 = arith.constant 0 : i32
    %c0_i32_1 = arith.constant 0 : i32
    return %arg0, %c0_i32, %c0_i32_0 : i32, i32, i32
  }
  func.func @transform_2(%arg0: i32) -> (i32, i32, i32) {
    %c0_i32 = arith.constant 0 : i32
    %c0_i32_0 = arith.constant 0 : i32
    %c0_i32_1 = arith.constant 0 : i32
    return %arg0, %c0_i32, %c0_i32_0 : i32, i32, i32
  }
  func.func @transform_3(%arg0: i32) -> (i32, i32) {
    %c0_i32 = arith.constant 0 : i32
    %c0_i32_0 = arith.constant 0 : i32
    %c0_i32_1 = arith.constant 0 : i32
    return %c0_i32, %c0_i32_0 : i32, i32
  }
  func.func @transform_4(%arg0: i32) -> (i32, i32) {
    %c0_i32 = arith.constant 0 : i32
    %c0_i32_0 = arith.constant 0 : i32
    %c0_i32_1 = arith.constant 0 : i32
    return %c0_i32, %c0_i32_0 : i32, i32
  }
  func.func @transform_5(%arg0: i32) -> (i32, i32, i32) {
    %c0_i32 = arith.constant 0 : i32
    %c0_i32_0 = arith.constant 0 : i32
    %c0_i32_1 = arith.constant 0 : i32
    return %arg0, %c0_i32, %c0_i32_0 : i32, i32, i32
  }
}

</mosaic_0001>

<llo_original>
// kernel: tpu_custom_call.1
$region0: #{tpu_custom_call.1}
  #allocation0 [shape = 'u32[]', space=smem, size = 0x4, offset = 0x4, fixed_abs, tag = 'smem constant byte address 0x4 - core index']
  #allocation1 [shape = 'u32[144,128]{1,0:T(1,128)}', space=vmem, size = 0x12000, scoped, tag = 'internal scratch']
  %s0 = inlined_call_operand.vmem [shape: f32[2,16,32], index: 0, kind: input, shape index: {}]
  %s1 = inlined_call_operand.hbm [shape: f32[2,16,16], index: 1, kind: input, shape index: {}]
  %s2 = inlined_call_operand.vmem [shape: f32[2,16,1], index: 2, kind: input, shape index: {}]
  %s3 = inlined_call_operand.hbm [shape: f32[32,128], index: 3, kind: input, shape index: {}]
  %s4 = inlined_call_operand.vmem [shape: f32[1,128], index: 4, kind: input, shape index: {}]
  %s5 = inlined_call_operand.hbm [shape: f32[2,16,128], index: 5, kind: output, shape index: {}]
  %s6 = sld [smem:[#allocation0]]
  $region61: #{tpu_custom_call.1} parent=0
    _
  %s8 = ssub.s32 1, %s6
  %s9 = scalar_select 0, %s8, %s6
  $region1: #{tpu_custom_call.1} parent=0
    #allocation2 [shape = 'u8[16384]{0}', space=vmem, size = 0x4000, scoped, tag = 'input window, operand 1']
    #allocation3 [shape = 's32[2]{0}', space=sflag, size = 0x8, scoped, tag = 'scoped memory for tpu_custom_call.1']
    #allocation4 [shape = 's32[2]{0}', space=sflag, size = 0x8, scoped, tag = 'scoped memory for tpu_custom_call.1']
    #allocation5 [shape = 'u8[16384]{0}', space=vmem, size = 0x4000, scoped, tag = 'input window, operand 3, single buffered']
    #allocation6 [shape = 's32[1]{0}', space=sflag, size = 0x4, scoped, tag = 'scoped memory for tpu_custom_call.1']
    #allocation7 [shape = 'u8[16384]{0}', space=vmem, size = 0x4000, scoped, tag = 'output window, operand 0']
    %10 = vsyncpa [#allocation3], 0
    %s11 = scalar_lea.sflag [#allocation3], 1
    %12 = vsyncpa %s11, 0
    %13 = vsyncpa [#allocation6], 0
    %14 = vsyncpa [#allocation4], 0
    %s15 = scalar_lea.sflag [#allocation4], 1
    %16 = vsyncpa %s15, 0
    loop: start=0, step=1, limit=4
    $region2: #{tpu_custom_call.1} parent=1 // loop_pre_header
      _
    $region3: #{tpu_custom_call.1} parent=1 // loop_header
      %s18 = sphi 0, %s22
      %p19 = scmp.ge.s32.totalorder %s18, 4
      %s28 = sphi 0, %s30
      %s31 = sphi 0, %s28
      %s32 = sphi 0, %s31
      %s48 = sphi 0, %s32
      %s54 = sphi 0, %s56
      %s57 = sphi 0, %s54
      %s58 = sphi 0, %s57
      %s74 = sphi 0, %s58
      %s80 = sphi 0, %s82
      %s83 = sphi 0, %s80
      %s84 = sphi 0, %s83
      %s100 = sphi 0, %s84
      %s104 = sphi 0, %s104
      %s106 = sphi 0, %s104
      %s107 = sphi 0, %s106
      %s121 = sphi 0, %s107
      %s125 = sphi 0, %s125
      %s127 = sphi 0, %s125
      %s128 = sphi 0, %s127
      %s142 = sphi 0, %s128
      %s148 = sphi 0, %s150
      %s151 = sphi 0, %s148
      %s152 = sphi 0, %s151
      %s168 = sphi 0, %s152
    $region4: #{tpu_custom_call.1} parent=1 // loop_header_branch
      %21 = sbr.rel (%p19) target = $region8
    $region5: #{tpu_custom_call.1} parent=1 // loop_body
      %s23 = ssub.s32 %s18, 1
      %s24 = ssub.s32 %s18, 2
      %s25 = sadd.s32 %s18, 1
      %s26 = ssub.s32 %s18, %s25
      %p27 = scmp.eq.s32.totalorder %s26, 0
      %s29 = sadd.s32 %s28, 1
      %s30 = scalar_select %p27, %s28, %s29
      %p33 = pneg %p27
      %p34 = scmp.eq.s32.totalorder %s18, 1
      %p35 = por %p33, %p34
      %p36 = scmp.ne.s32.totalorder %s28, %s31
      %p37 = scmp.eq.s32.totalorder %s18, 0
      %p38 = por %p36, %p37
      %p39 = scmp.ne.s32.totalorder %s28, %s31
      %p40 = scmp.eq.s32.totalorder %s23, 1
      %p41 = por %p39, %p40
      %p42 = scmp.ne.s32.totalorder %s31, %s32
      %p43 = scmp.eq.s32.totalorder %s23, 0
      %p44 = por %p42, %p43
      %p45 = scmp.ne.s32.totalorder %s31, %s32
      %p46 = scmp.eq.s32.totalorder %s24, 1
      %p47 = por %p45, %p46
      %p49 = scmp.ne.s32.totalorder %s32, %s48
      %p50 = scmp.eq.s32.totalorder %s24, 0
      %p51 = por %p49, %p50
      %s52 = ssub.s32 %s18, %s25
      %p53 = scmp.eq.s32.totalorder %s52, 0
      %s55 = sadd.s32 %s54, 1
      %s56 = scalar_select %p53, %s54, %s55
      %p59 = pneg %p53
      %p60 = scmp.eq.s32.totalorder %s18, 1
      %p61 = por %p59, %p60
      %p62 = scmp.ne.s32.totalorder %s54, %s57
      %p63 = scmp.eq.s32.totalorder %s18, 0
      %p64 = por %p62, %p63
      %p65 = scmp.ne.s32.totalorder %s54, %s57
      %p66 = scmp.eq.s32.totalorder %s23, 1
      %p67 = por %p65, %p66
      %p68 = scmp.ne.s32.totalorder %s57, %s58
      %p69 = scmp.eq.s32.totalorder %s23, 0
      %p70 = por %p68, %p69
      %p71 = scmp.ne.s32.totalorder %s57, %s58
      %p72 = scmp.eq.s32.totalorder %s24, 1
      %p73 = por %p71, %p72
      %p75 = scmp.ne.s32.totalorder %s58, %s74
      %p76 = scmp.eq.s32.totalorder %s24, 0
      %p77 = por %p75, %p76
      %s78 = ssub.s32 %s18, %s25
      %p79 = scmp.eq.s32.totalorder %s78, 0
      %s81 = sadd.s32 %s80, 1
      %s82 = scalar_select %p79, %s80, %s81
      %p85 = pneg %p79
      %p86 = scmp.eq.s32.totalorder %s18, 1
      %p87 = por %p85, %p86
      %p88 = scmp.ne.s32.totalorder %s80, %s83
      %p89 = scmp.eq.s32.totalorder %s18, 0
      %p90 = por %p88, %p89
      %p91 = scmp.ne.s32.totalorder %s80, %s83
      %p92 = scmp.eq.s32.totalorder %s23, 1
      %p93 = por %p91, %p92
      %p94 = scmp.ne.s32.totalorder %s83, %s84
      %p95 = scmp.eq.s32.totalorder %s23, 0
      %p96 = por %p94, %p95
      %p97 = scmp.ne.s32.totalorder %s83, %s84
      %p98 = scmp.eq.s32.totalorder %s24, 1
      %p99 = por %p97, %p98
      %p101 = scmp.ne.s32.totalorder %s84, %s100
      %p102 = scmp.eq.s32.totalorder %s24, 0
      %p103 = por %p101, %p102
      %s105 = sadd.s32 %s104, 1
      %p108 = scmp.eq.s32.totalorder %s18, 1
      %p109 = scmp.ne.s32.totalorder %s104, %s106
      %p110 = scmp.eq.s32.totalorder %s18, 0
      %p111 = por %p109, %p110
      %p112 = scmp.ne.s32.totalorder %s104, %s106
      %p113 = scmp.eq.s32.totalorder %s23, 1
      %p114 = por %p112, %p113
      %p115 = scmp.ne.s32.totalorder %s106, %s107
      %p116 = scmp.eq.s32.totalorder %s23, 0
      %p117 = por %p115, %p116
      %p118 = scmp.ne.s32.totalorder %s106, %s107
      %p119 = scmp.eq.s32.totalorder %s24, 1
      %p120 = por %p118, %p119
      %p122 = scmp.ne.s32.totalorder %s107, %s121
      %p123 = scmp.eq.s32.totalorder %s24, 0
      %p124 = por %p122, %p123
      %s126 = sadd.s32 %s125, 1
      %p129 = scmp.eq.s32.totalorder %s18, 1
      %p130 = scmp.ne.s32.totalorder %s125, %s127
      %p131 = scmp.eq.s32.totalorder %s18, 0
      %p132 = por %p130, %p131
      %p133 = scmp.ne.s32.totalorder %s125, %s127
      %p134 = scmp.eq.s32.totalorder %s23, 1
      %p135 = por %p133, %p134
      %p136 = scmp.ne.s32.totalorder %s127, %s128
      %p137 = scmp.eq.s32.totalorder %s23, 0
      %p138 = por %p136, %p137
      %p139 = scmp.ne.s32.totalorder %s127, %s128
      %p140 = scmp.eq.s32.totalorder %s24, 1
      %p141 = por %p139, %p140
      %p143 = scmp.ne.s32.totalorder %s128, %s142
      %p144 = scmp.eq.s32.totalorder %s24, 0
      %p145 = por %p143, %p144
      %s146 = ssub.s32 %s18, %s25
      %p147 = scmp.eq.s32.totalorder %s146, 0
      %s149 = sadd.s32 %s148, 1
      %s150 = scalar_select %p147, %s148, %s149
      %p153 = pneg %p147
      %p154 = scmp.eq.s32.totalorder %s18, 1
      %p155 = por %p153, %p154
      %p156 = scmp.ne.s32.totalorder %s148, %s151
      %p157 = scmp.eq.s32.totalorder %s18, 0
      %p158 = por %p156, %p157
      %p159 = scmp.ne.s32.totalorder %s148, %s151
      %p160 = scmp.eq.s32.totalorder %s23, 1
      %p161 = por %p159, %p160
      %p162 = scmp.ne.s32.totalorder %s151, %s152
      %p163 = scmp.eq.s32.totalorder %s23, 0
      %p164 = por %p162, %p163
      %p165 = scmp.ne.s32.totalorder %s151, %s152
      %p166 = scmp.eq.s32.totalorder %s24, 1
      %p167 = por %p165, %p166
      %p169 = scmp.ne.s32.totalorder %s152, %s168
      %p170 = scmp.eq.s32.totalorder %s24, 0
      %p171 = por %p169, %p170
      %p172 = scmp.le.s32.totalorder 1, %s18
      %p173 = scmp.lt.s32.totalorder %s18, 3
      %p174 = pnand %p172, %p173
      %p175 = pneg %p174
      // Predicated region
      $region9: #{tpu_custom_call.1} parent=5 // pred_check
        _
      $region10: #{tpu_custom_call.1} parent=5 // pred_check_branch
        %177 = sbr.rel (%p174) target = $region12
      $region11: #{tpu_custom_call.1} parent=5 // pred_region
        %s178 = ssub.s32 %s18, 1
        // Predicated region
        $region13: #{tpu_custom_call.1} parent=11 // pred_check
          %p179 = pneg %p117
        $region14: #{tpu_custom_call.1} parent=11 // pred_check_branch
          %181 = sbr.rel (%p179) target = $region16
        $region15: #{tpu_custom_call.1} parent=11 // pred_region
          %s183 = ssub.s32 512, 512
          %184 = vsyncadd [#allocation6], %s183
          %s185 = sshll.u32 [#allocation5], 4
          %s186 = int_to_ptr.vmem [resolvable:$true] %s185
          %191 = dma.hbm_to_vmem [thread:$0]  %s3, 512, %s186, [#allocation6], 128, 128, 8
        $region16: #{tpu_custom_call.1} parent=11 // pred_fallthru
          _
        // Predicated region
        $region17: #{tpu_custom_call.1} parent=11 // pred_check
          %p192 = pneg %p138
        $region18: #{tpu_custom_call.1} parent=11 // pred_check_branch
          %194 = sbr.rel (%p192) target = $region20
        $region19: #{tpu_custom_call.1} parent=11 // pred_region
          _
        $region20: #{tpu_custom_call.1} parent=11 // pred_fallthru
          _
      $region12: #{tpu_custom_call.1} parent=5 // pred_fallthru
        _
      %p195 = scmp.lt.s32.totalorder %s18, 2
      // Predicated region
      $region21: #{tpu_custom_call.1} parent=5 // pred_check
        %p196 = pneg %p195
      $region22: #{tpu_custom_call.1} parent=5 // pred_check_branch
        %198 = sbr.rel (%p196) target = $region24
      $region23: #{tpu_custom_call.1} parent=5 // pred_region
        // Predicated region
        $region25: #{tpu_custom_call.1} parent=23 // pred_check
          %p199 = pneg %p38
        $region26: #{tpu_custom_call.1} parent=23 // pred_check_branch
          %201 = sbr.rel (%p199) target = $region28
        $region27: #{tpu_custom_call.1} parent=23 // pred_region
          %p202 = scmp.lt.s32.totalorder %s18, 1
          %s203 = scalar_select %p202, %s18, 1
          %s204 = smul.addr %s203, 2
          %s205 = smul.addr %s204, 8
          %s206 = scalar_lea.vmem %s0, %s205
        $region28: #{tpu_custom_call.1} parent=23 // pred_fallthru
          _
        // Predicated region
        $region29: #{tpu_custom_call.1} parent=23 // pred_check
          %p207 = pneg %p64
        $region30: #{tpu_custom_call.1} parent=23 // pred_check_branch
          %209 = sbr.rel (%p207) target = $region32
        $region31: #{tpu_custom_call.1} parent=23 // pred_region
          %s210 = sand.u32 %s54, 1
          %s211 = scalar_lea.sflag [#allocation3], %s210
          %s212 = sand.u32 %s54, 1
          %s213 = smul.addr %s212, 16
          %s214 = scalar_lea.vmem [#allocation2], %s213
          %s216 = ssub.s32 256, 256
          %217 = vsyncadd %s211, %s216
          %s218 = smul.addr %s18, 2
          %s219 = smul.addr %s218, 128
          %s220 = scalar_lea.hbm %s1, %s219
          %s221 = sshll.u32 %s214, 4
          %s222 = int_to_ptr.vmem [resolvable:$true] %s221
          %227 = dma.hbm_to_vmem [thread:$0]  %s220, 256, %s222, %s211, 128, 128, 8
        $region32: #{tpu_custom_call.1} parent=23 // pred_fallthru
          _
        // Predicated region
        $region33: #{tpu_custom_call.1} parent=23 // pred_check
          %p228 = pneg %p90
        $region34: #{tpu_custom_call.1} parent=23 // pred_check_branch
          %230 = sbr.rel (%p228) target = $region36
        $region35: #{tpu_custom_call.1} parent=23 // pred_region
          %p231 = scmp.lt.s32.totalorder %s18, 1
          %s232 = scalar_select %p231, %s18, 1
          %s233 = smul.addr %s232, 2
          %s234 = smul.addr %s233, 8
          %s235 = scalar_lea.vmem %s2, %s234
        $region36: #{tpu_custom_call.1} parent=23 // pred_fallthru
          _
      $region24: #{tpu_custom_call.1} parent=5 // pred_fallthru
        _
      %p236 = scmp.le.s32.totalorder 1, %s18
      %p237 = scmp.lt.s32.totalorder %s18, 3
      %p238 = pnand %p236, %p237
      %p239 = pneg %p238
      // Predicated region
      $region37: #{tpu_custom_call.1} parent=5 // pred_check
        _
      $region38: #{tpu_custom_call.1} parent=5 // pred_check_branch
        %241 = sbr.rel (%p238) target = $region40
      $region39: #{tpu_custom_call.1} parent=5 // pred_region
        %s242 = ssub.s32 %s18, 1
        %s243 = sand.u32 %s57, 1
        %s244 = scalar_lea.sflag [#allocation3], %s243
        %s245 = sand.u32 %s57, 1
        %s246 = smul.addr %s245, 16
        %s247 = scalar_lea.vmem [#allocation2], %s246
        // Predicated region
        $region41: #{tpu_custom_call.1} parent=39 // pred_check
          %p248 = pneg %p70
        $region42: #{tpu_custom_call.1} parent=39 // pred_check_branch
          %250 = sbr.rel (%p248) target = $region44
        $region43: #{tpu_custom_call.1} parent=39 // pred_region
          %251 = dma.done %s244, 256
        $region44: #{tpu_custom_call.1} parent=39 // pred_fallthru
          _
        // Predicated region
        $region45: #{tpu_custom_call.1} parent=39 // pred_check
          %p252 = pneg %p117
        $region46: #{tpu_custom_call.1} parent=39 // pred_check_branch
          %254 = sbr.rel (%p252) target = $region48
        $region47: #{tpu_custom_call.1} parent=39 // pred_region
          %255 = dma.done [#allocation6], 512
        $region48: #{tpu_custom_call.1} parent=39 // pred_fallthru
          _
        %p256 = scmp.lt.s32.totalorder %s23, 1
        %s257 = scalar_select %p256, %s23, 1
        %s258 = smul.addr %s257, 2
        %s259 = smul.addr %s258, 8
        %s260 = scalar_lea.vmem %s0, %s259
        %p261 = pneg %p44
        %p262 = pneg %p41
        %s263 = sand.u32 %s57, 1
        %s264 = scalar_lea.sflag [#allocation3], %s263
        %s265 = sand.u32 %s57, 1
        %s266 = smul.addr %s265, 16
        %s267 = scalar_lea.vmem [#allocation2], %s266
        %p268 = pneg %p70
        %p269 = pneg %p67
        %p270 = scmp.lt.s32.totalorder %s23, 1
        %s271 = scalar_select %p270, %s23, 1
        %s272 = smul.addr %s271, 2
        %s273 = smul.addr %s272, 8
        %s274 = scalar_lea.vmem %s2, %s273
        %p275 = pneg %p96
        %p276 = pneg %p93
        %p277 = pneg %p117
        %p278 = pneg %p114
        %p279 = pneg %p138
        %p280 = pneg %p135
        %p281 = pneg %p164
        %p282 = pneg %p161
        %s283 = sand.u32 %s151, 1
        %s284 = scalar_lea.sflag [#allocation4], %s283
        %s285 = sand.u32 %s151, 1
        %s286 = smul.addr %s285, 16
        %s287 = scalar_lea.vmem [#allocation7], %s286
        %p288 = scmp.lt.s32.totalorder %s23, 1
        %s289 = scalar_select %p288, %s23, 1
        %s290 = smul.addr %s289, 2
        %s291 = smul.addr %s290, 8
        %s292 = scalar_lea.vmem %s0, %s291
        %p293 = scmp.lt.s32.totalorder %s23, 1
        %s294 = scalar_select %p293, %s23, 1
        %s295 = smul.addr %s294, 2
        %s296 = smul.addr %s295, 8
        %s297 = scalar_lea.vmem %s2, %s296
        %v298 = vld [vmem:[%s297] sm:$0xff]
        %v299 = vld [vmem:[%s297 + $0x8] sm:$0xff]
        %v300 = vld [vmem:[%s247] sm:$0xff]
        %v301 = vld [vmem:[%s247 + $0x8] sm:$0xff]
        %303 = vset.pattern.permute.xlu0 0
        %304 = vperm.xlu0 %303, %v298
        %v305 = vpop.permute.xlu0 %304
        %308 = vset.pattern.permute.xlu0 0
        %309 = vperm.xlu0 %308, %v299
        %v310 = vpop.permute.xlu0 %309
        %v312 = vmul.f32 %v300, %v305
        %v313 = vmul.f32 %v301, %v310
        %v314 = vld [vmem:[%s292] sm:$0xff]
        %v315 = vld [vmem:[%s292 + $0x8] sm:$0xff]
        %vm316 = vcmask 130048
        %v318 = vsel %vm316, %v312, 0
        %v321 = vsel %vm316, %v313, 0
        %323 = vmatprep.subr.mxu0 0.0
        %324 = vmatpush1.msra.mxu0 0.0
        %325 = vmatprep.subr.mxu0 0.0
        %326 = vmatpush1.msra.mxu0 0.0
        %327 = vmatprep.subr.mxu0 0.0
        %328 = vmatpush1.msra.mxu0 0.0
        %329 = vmatprep.subr.mxu0 0.0
        %330 = vmatpush1.msra.mxu0 0.0
        %331 = vmatprep.subr.mxu0 0.0
        %332 = vmatpush1.msra.mxu0 0.0
        %333 = vmatprep.subr.mxu0 0.0
        %334 = vmatpush1.msra.mxu0 0.0
        %335 = vmatprep.subr.mxu0 0.0
        %336 = vmatpush1.msra.mxu0 0.0
        %337 = vmatprep.subr.mxu0 0.0
        %338 = vmatpush1.msra.mxu0 0.0
        %339 = vmatprep.subr.mxu0 0.0
        %340 = vmatpush1.msra.mxu0 0.0
        %341 = vmatprep.subr.mxu0 0.0
        %342 = vmatpush1.msra.mxu0 0.0
        %343 = vmatprep.subr.mxu0 0.0
        %344 = vmatpush1.msra.mxu0 0.0
        %345 = vmatprep.subr.mxu0 0.0
        %346 = vmatpush1.msra.mxu0 0.0
        %347 = vmatprep.subr.mxu0 0.0
        %348 = vmatpush1.msra.mxu0 0.0
        %349 = vmatprep.subr.mxu0 0.0
        %350 = vmatpush1.msra.mxu0 0.0
        %351 = vmatprep.subr.mxu0 0.0
        %352 = vmatpush1.msra.mxu0 %v315
        %353 = vmatprep.subr.mxu0 0.0
        %354 = vmatpush1.msra.mxu0 %v314
        %355 = vmatprep.subr.mxu0 0.0
        %356 = vmatpush2.msra.mxu0 0.0
        %357 = vmatprep.subr.mxu0 0.0
        %358 = vmatpush2.msra.mxu0 0.0
        %359 = vmatprep.subr.mxu0 0.0
        %360 = vmatpush2.msra.mxu0 0.0
        %361 = vmatprep.subr.mxu0 0.0
        %362 = vmatpush2.msra.mxu0 0.0
        %363 = vmatprep.subr.mxu0 0.0
        %364 = vmatpush2.msra.mxu0 0.0
        %365 = vmatprep.subr.mxu0 0.0
        %366 = vmatpush2.msra.mxu0 0.0
        %367 = vmatprep.subr.mxu0 0.0
        %368 = vmatpush2.msra.mxu0 0.0
        %369 = vmatprep.subr.mxu0 0.0
        %370 = vmatpush2.msra.mxu0 0.0
        %371 = vmatprep.subr.mxu0 0.0
        %372 = vmatpush2.msra.mxu0 0.0
        %373 = vmatprep.subr.mxu0 0.0
        %374 = vmatpush2.msra.mxu0 0.0
        %375 = vmatprep.subr.mxu0 0.0
        %376 = vmatpush2.msra.mxu0 0.0
        %377 = vmatprep.subr.mxu0 0.0
        %378 = vmatpush2.msra.mxu0 0.0
        %379 = vmatprep.subr.mxu0 0.0
        %380 = vmatpush2.msra.mxu0 0.0
        %381 = vmatprep.subr.mxu0 0.0
        %382 = vmatpush2.msra.mxu0 0.0
        %383 = vmatprep.subr.mxu0 0.0
        %384 = vmatpush2.msra.mxu0 0.0
        %385 = vmatprep.subr.mxu0 0.0
        %386 = vmatpush2.msra.mxu0 0.0
        %387 = vmatprep.mubr.f32.mxu0 0.0
        %388 = vmatmul.mubr.f32.gmra.mxu0 %v318
        %v389 = vpop.f32.mrf.mxu0
        %v390 = vadd.f32 0.0, %v389
        %v391 = vpop.f32.mrf.mxu0
        %392 = vmatprep.mubr.f32.mxu0 0.0
        %393 = vmatmul.mubr.f32.gmra.mxu0 %v321
        %v394 = vpop.f32.mrf.mxu0
        %v395 = vadd.f32 0.0, %v394
        %v396 = vpop.f32.mrf.mxu0
        %397 = vdwg.mxu0
        %v398 = vld [vmem:[#allocation5] sm:$0xff]
        %v399 = vld [vmem:[#allocation5 + $0x8] sm:$0xff]
        %v400 = vld [vmem:[#allocation5 + $0x10] sm:$0xff]
        %v401 = vld [vmem:[#allocation5 + $0x18] sm:$0xff]
        %vm402 = vcmask 261120
        %v404 = vsel %vm402, %v390, 0
        %v407 = vsel %vm402, %v395, 0
        %409 = vmatprep.subr.mxu0 0.0
        %410 = vmatpush1.msra.mxu0 0.0
        %411 = vmatprep.subr.mxu0 0.0
        %412 = vmatpush1.msra.mxu0 0.0
        %413 = vmatprep.subr.mxu0 0.0
        %414 = vmatpush1.msra.mxu0 0.0
        %415 = vmatprep.subr.mxu0 0.0
        %416 = vmatpush1.msra.mxu0 0.0
        %417 = vmatprep.subr.mxu0 0.0
        %418 = vmatpush1.msra.mxu0 0.0
        %419 = vmatprep.subr.mxu0 0.0
        %420 = vmatpush1.msra.mxu0 0.0
        %421 = vmatprep.subr.mxu0 0.0
        %422 = vmatpush1.msra.mxu0 0.0
        %423 = vmatprep.subr.mxu0 0.0
        %424 = vmatpush1.msra.mxu0 0.0
        %425 = vmatprep.subr.mxu0 0.0
        %426 = vmatpush1.msra.mxu0 0.0
        %427 = vmatprep.subr.mxu0 0.0
        %428 = vmatpush1.msra.mxu0 0.0
        %429 = vmatprep.subr.mxu0 0.0
        %430 = vmatpush1.msra.mxu0 0.0
        %431 = vmatprep.subr.mxu0 0.0
        %432 = vmatpush1.msra.mxu0 0.0
        %433 = vmatprep.subr.mxu0 0.0
        %434 = vmatpush1.msra.mxu0 %v401
        %435 = vmatprep.subr.mxu0 0.0
        %436 = vmatpush1.msra.mxu0 %v400
        %437 = vmatprep.subr.mxu0 0.0
        %438 = vmatpush1.msra.mxu0 %v399
        %439 = vmatprep.subr.mxu0 0.0
        %440 = vmatpush1.msra.mxu0 %v398
        %441 = vmatprep.subr.mxu0 0.0
        %442 = vmatpush2.msra.mxu0 0.0
        %443 = vmatprep.subr.mxu0 0.0
        %444 = vmatpush2.msra.mxu0 0.0
        %445 = vmatprep.subr.mxu0 0.0
        %446 = vmatpush2.msra.mxu0 0.0
        %447 = vmatprep.subr.mxu0 0.0
        %448 = vmatpush2.msra.mxu0 0.0
        %449 = vmatprep.subr.mxu0 0.0
        %450 = vmatpush2.msra.mxu0 0.0
        %451 = vmatprep.subr.mxu0 0.0
        %452 = vmatpush2.msra.mxu0 0.0
        %453 = vmatprep.subr.mxu0 0.0
        %454 = vmatpush2.msra.mxu0 0.0
        %455 = vmatprep.subr.mxu0 0.0
        %456 = vmatpush2.msra.mxu0 0.0
        %457 = vmatprep.subr.mxu0 0.0
        %458 = vmatpush2.msra.mxu0 0.0
        %459 = vmatprep.subr.mxu0 0.0
        %460 = vmatpush2.msra.mxu0 0.0
        %461 = vmatprep.subr.mxu0 0.0
        %462 = vmatpush2.msra.mxu0 0.0
        %463 = vmatprep.subr.mxu0 0.0
        %464 = vmatpush2.msra.mxu0 0.0
        %465 = vmatprep.subr.mxu0 0.0
        %466 = vmatpush2.msra.mxu0 0.0
        %467 = vmatprep.subr.mxu0 0.0
        %468 = vmatpush2.msra.mxu0 0.0
        %469 = vmatprep.subr.mxu0 0.0
        %470 = vmatpush2.msra.mxu0 0.0
        %471 = vmatprep.subr.mxu0 0.0
        %472 = vmatpush2.msra.mxu0 0.0
        %473 = vmatprep.mubr.f32.mxu0 0.0
        %474 = vmatmul.mubr.f32.gmra.mxu0 %v404
        %v475 = vpop.f32.mrf.mxu0
        %v476 = vadd.f32 0.0, %v475
        %v477 = vpop.f32.mrf.mxu0
        %478 = vmatprep.mubr.f32.mxu0 0.0
        %479 = vmatmul.mubr.f32.gmra.mxu0 %v407
        %v480 = vpop.f32.mrf.mxu0
        %v481 = vadd.f32 0.0, %v480
        %v482 = vpop.f32.mrf.mxu0
        %483 = vdwg.mxu0
        %v484 = vld [vmem:[%s4] sm:$0x1]
        %v486 = vlaneseq
        %v487 = vshrl.u32 %v486, 7
        %v488 = vsub.s32 0, %v487
        %v489 = vrot.slane %v484, %v488
        %v491 = vadd.f32 %v476, %v489
        %v492 = vadd.f32 %v481, %v489
        %493 = vst [vmem:[%s287] sm:$0xff] %v491
        %494 = vst [vmem:[%s287 + $0x8] sm:$0xff] %v492
        %s495 = sand.u32 %s151, 1
        %s496 = scalar_lea.sflag [#allocation4], %s495
        %s497 = sand.u32 %s151, 1
        %s498 = smul.addr %s497, 16
        %s499 = scalar_lea.vmem [#allocation7], %s498
        // Predicated region
        $region49: #{tpu_custom_call.1} parent=39 // pred_check
          %p500 = pneg %p161
        $region50: #{tpu_custom_call.1} parent=39 // pred_check_branch
          %502 = sbr.rel (%p500) target = $region52
        $region51: #{tpu_custom_call.1} parent=39 // pred_region
          %s504 = ssub.s32 256, 256
          %505 = vsyncadd %s496, %s504
          %s506 = smul.addr %s23, 2
          %s507 = smul.addr %s506, 128
          %s508 = scalar_lea.hbm %s5, %s507
          %s509 = sshll.u32 %s499, 4
          %s510 = int_to_ptr.vmem [resolvable:$true] %s509
          %515 = dma.vmem_to_hbm [thread:$0]  %s510, 256, %s508, %s496, 128, 128, 8
        $region52: #{tpu_custom_call.1} parent=39 // pred_fallthru
          _
      $region40: #{tpu_custom_call.1} parent=5 // pred_fallthru
        _
      %p516 = scmp.le.s32.totalorder 2, %s18
      // Predicated region
      $region53: #{tpu_custom_call.1} parent=5 // pred_check
        %p517 = pneg %p516
      $region54: #{tpu_custom_call.1} parent=5 // pred_check_branch
        %519 = sbr.rel (%p517) target = $region56
      $region55: #{tpu_custom_call.1} parent=5 // pred_region
        %s520 = ssub.s32 %s18, 2
        // Predicated region
        $region57: #{tpu_custom_call.1} parent=55 // pred_check
          %p521 = pneg %p167
        $region58: #{tpu_custom_call.1} parent=55 // pred_check_branch
          %523 = sbr.rel (%p521) target = $region60
        $region59: #{tpu_custom_call.1} parent=55 // pred_region
          %s524 = sand.u32 %s152, 1
          %s525 = scalar_lea.sflag [#allocation4], %s524
          %s526 = sand.u32 %s152, 1
          %s527 = smul.addr %s526, 16
          %s528 = scalar_lea.vmem [#allocation7], %s527
          %529 = dma.done %s525, 256
        $region60: #{tpu_custom_call.1} parent=55 // pred_fallthru
          _
      $region56: #{tpu_custom_call.1} parent=5 // pred_fallthru
        _
    $region6: #{tpu_custom_call.1} parent=1 // loop_footer
      %s22 = sadd.s32 1, %s18
    $region7: #{tpu_custom_call.1} parent=1 // loop_footer_branch
      %17 = sbr.rel target = $region3
    $region8: #{tpu_custom_call.1} parent=1 // loop_exit
      _
    %530 = vsyncpa [#allocation3], 1
    %s531 = scalar_lea.sflag [#allocation3], 1
    %532 = vsyncpa %s531, 1
    %533 = vsyncpa [#allocation6], 1
    %534 = vsyncpa [#allocation4], 1
    %s535 = scalar_lea.sflag [#allocation4], 1
    %536 = vsyncpa %s535, 1

// kernel: tpu_custom_call.1
$region0: #{tpu_custom_call.1}
  #allocation0 [shape = 'u32[]', space=smem, size = 0x4, offset = 0x4, fixed_abs, tag = 'smem constant byte address 0x4 - core index']
  #allocation1 [shape = 'u32[144,128]{1,0:T(1,128)}', space=vmem, size = 0x12000, scoped, tag = 'internal scratch']
  %s0 = inlined_call_operand.vmem [shape: f32[2,16,32], index: 0, kind: input, shape index: {}]
  %s1 = inlined_call_operand.hbm [shape: f32[2,16,16], index: 1, kind: input, shape index: {}]
  %s2 = inlined_call_operand.vmem [shape: f32[2,16,1], index: 2, kind: input, shape index: {}]
  %s3 = inlined_call_operand.hbm [shape: f32[32,128], index: 3, kind: input, shape index: {}]
  %s4 = inlined_call_operand.vmem [shape: f32[1,128], index: 4, kind: input, shape index: {}]
  %s5 = inlined_call_operand.hbm [shape: f32[2,16,128], index: 5, kind: output, shape index: {}]
  %s6 = sld [smem:[#allocation0]]
  $region61: #{tpu_custom_call.1} parent=0
    _
  %s8 = ssub.s32 1, %s6
  %s9 = scalar_select 0, %s8, %s6
  $region1: #{tpu_custom_call.1} parent=0
    #allocation2 [shape = 'u8[16384]{0}', space=vmem, size = 0x4000, scoped, tag = 'input window, operand 1']
    #allocation3 [shape = 's32[2]{0}', space=sflag, size = 0x8, scoped, tag = 'scoped memory for tpu_custom_call.1']
    #allocation4 [shape = 's32[2]{0}', space=sflag, size = 0x8, scoped, tag = 'scoped memory for tpu_custom_call.1']
    #allocation5 [shape = 'u8[16384]{0}', space=vmem, size = 0x4000, scoped, tag = 'input window, operand 3, single buffered']
    #allocation6 [shape = 's32[1]{0}', space=sflag, size = 0x4, scoped, tag = 'scoped memory for tpu_custom_call.1']
    #allocation7 [shape = 'u8[16384]{0}', space=vmem, size = 0x4000, scoped, tag = 'output window, operand 0']
    %10 = vsyncpa [#allocation3], 0
    %s11 = scalar_lea.sflag [#allocation3], 1
    %12 = vsyncpa %s11, 0
    %13 = vsyncpa [#allocation6], 0
    %14 = vsyncpa [#allocation4], 0
    %s15 = scalar_lea.sflag [#allocation4], 1
    %16 = vsyncpa %s15, 0
    loop: start=0, step=1, limit=4
    $region2: #{tpu_custom_call.1} parent=1 // loop_pre_header
      _
    $region3: #{tpu_custom_call.1} parent=1 // loop_header
      %s18 = sphi 0, %s22
      %p19 = scmp.ge.s32.totalorder %s18, 4
      %s28 = sphi 0, %s30
      %s31 = sphi 0, %s28
      %s32 = sphi 0, %s31
      %s48 = sphi 0, %s32
      %s54 = sphi 0, %s56
      %s57 = sphi 0, %s54
      %s58 = sphi 0, %s57
      %s74 = sphi 0, %s58
      %s80 = sphi 0, %s82
      %s83 = sphi 0, %s80
      %s84 = sphi 0, %s83
      %s100 = sphi 0, %s84
      %s104 = sphi 0, %s104
      %s106 = sphi 0, %s104
      %s107 = sphi 0, %s106
      %s121 = sphi 0, %s107
      %s125 = sphi 0, %s125
      %s127 = sphi 0, %s125
      %s128 = sphi 0, %s127
      %s142 = sphi 0, %s128
      %s148 = sphi 0, %s150
      %s151 = sphi 0, %s148
      %s152 = sphi 0, %s151
      %s168 = sphi 0, %s152
    $region4: #{tpu_custom_call.1} parent=1 // loop_header_branch
      %21 = sbr.rel (%p19) target = $region8
    $region5: #{tpu_custom_call.1} parent=1 // loop_body
      %s23 = ssub.s32 %s18, 1
      %s24 = ssub.s32 %s18, 2
      %s25 = sadd.s32 %s18, 1
      %s26 = ssub.s32 %s18, %s25
      %p27 = scmp.eq.s32.totalorder %s26, 0
      %s29 = sadd.s32 %s28, 1
      %s30 = scalar_select %p27, %s28, %s29
      %p33 = pneg %p27
      %p34 = scmp.eq.s32.totalorder %s18, 1
      %p35 = por %p33, %p34
      %p36 = scmp.ne.s32.totalorder %s28, %s31
      %p37 = scmp.eq.s32.totalorder %s18, 0
      %p38 = por %p36, %p37
      %p39 = scmp.ne.s32.totalorder %s28, %s31
      %p40 = scmp.eq.s32.totalorder %s23, 1
      %p41 = por %p39, %p40
      %p42 = scmp.ne.s32.totalorder %s31, %s32
      %p43 = scmp.eq.s32.totalorder %s23, 0
      %p44 = por %p42, %p43
      %p45 = scmp.ne.s32.totalorder %s31, %s32
      %p46 = scmp.eq.s32.totalorder %s24, 1
      %p47 = por %p45, %p46
      %p49 = scmp.ne.s32.totalorder %s32, %s48
      %p50 = scmp.eq.s32.totalorder %s24, 0
      %p51 = por %p49, %p50
      %s52 = ssub.s32 %s18, %s25
      %p53 = scmp.eq.s32.totalorder %s52, 0
      %s55 = sadd.s32 %s54, 1
      %s56 = scalar_select %p53, %s54, %s55
      %p59 = pneg %p53
      %p60 = scmp.eq.s32.totalorder %s18, 1
      %p61 = por %p59, %p60
      %p62 = scmp.ne.s32.totalorder %s54, %s57
      %p63 = scmp.eq.s32.totalorder %s18, 0
      %p64 = por %p62, %p63
      %p65 = scmp.ne.s32.totalorder %s54, %s57
      %p66 = scmp.eq.s32.totalorder %s23, 1
      %p67 = por %p65, %p66
      %p68 = scmp.ne.s32.totalorder %s57, %s58
      %p69 = scmp.eq.s32.totalorder %s23, 0
      %p70 = por %p68, %p69
      %p71 = scmp.ne.s32.totalorder %s57, %s58
      %p72 = scmp.eq.s32.totalorder %s24, 1
      %p73 = por %p71, %p72
      %p75 = scmp.ne.s32.totalorder %s58, %s74
      %p76 = scmp.eq.s32.totalorder %s24, 0
      %p77 = por %p75, %p76
      %s78 = ssub.s32 %s18, %s25
      %p79 = scmp.eq.s32.totalorder %s78, 0
      %s81 = sadd.s32 %s80, 1
      %s82 = scalar_select %p79, %s80, %s81
      %p85 = pneg %p79
      %p86 = scmp.eq.s32.totalorder %s18, 1
      %p87 = por %p85, %p86
      %p88 = scmp.ne.s32.totalorder %s80, %s83
      %p89 = scmp.eq.s32.totalorder %s18, 0
      %p90 = por %p88, %p89
      %p91 = scmp.ne.s32.totalorder %s80, %s83
      %p92 = scmp.eq.s32.totalorder %s23, 1
      %p93 = por %p91, %p92
      %p94 = scmp.ne.s32.totalorder %s83, %s84
      %p95 = scmp.eq.s32.totalorder %s23, 0
      %p96 = por %p94, %p95
      %p97 = scmp.ne.s32.totalorder %s83, %s84
      %p98 = scmp.eq.s32.totalorder %s24, 1
      %p99 = por %p97, %p98
      %p101 = scmp.ne.s32.totalorder %s84, %s100
      %p102 = scmp.eq.s32.totalorder %s24, 0
      %p103 = por %p101, %p102
      %s105 = sadd.s32 %s104, 1
      %p108 = scmp.eq.s32.totalorder %s18, 1
      %p109 = scmp.ne.s32.totalorder %s104, %s106
      %p110 = scmp.eq.s32.totalorder %s18, 0
      %p111 = por %p109, %p110
      %p112 = scmp.ne.s32.totalorder %s104, %s106
      %p113 = scmp.eq.s32.totalorder %s23, 1
      %p114 = por %p112, %p113
      %p115 = scmp.ne.s32.totalorder %s106, %s107
      %p116 = scmp.eq.s32.totalorder %s23, 0
      %p117 = por %p115, %p116
      %p118 = scmp.ne.s32.totalorder %s106, %s107
      %p119 = scmp.eq.s32.totalorder %s24, 1
      %p120 = por %p118, %p119
      %p122 = scmp.ne.s32.totalorder %s107, %s121
      %p123 = scmp.eq.s32.totalorder %s24, 0
      %p124 = por %p122, %p123
      %s126 = sadd.s32 %s125, 1
      %p129 = scmp.eq.s32.totalorder %s18, 1
      %p130 = scmp.ne.s32.totalorder %s125, %s127
      %p131 = scmp.eq.s32.totalorder %s18, 0
      %p132 = por %p130, %p131
      %p133 = scmp.ne.s32.totalorder %s125, %s127
      %p134 = scmp.eq.s32.totalorder %s23, 1
      %p135 = por %p133, %p134
      %p136 = scmp.ne.s32.totalorder %s127, %s128
      %p137 = scmp.eq.s32.totalorder %s23, 0
      %p138 = por %p136, %p137
      %p139 = scmp.ne.s32.totalorder %s127, %s128
      %p140 = scmp.eq.s32.totalorder %s24, 1
      %p141 = por %p139, %p140
      %p143 = scmp.ne.s32.totalorder %s128, %s142
      %p144 = scmp.eq.s32.totalorder %s24, 0
      %p145 = por %p143, %p144
      %s146 = ssub.s32 %s18, %s25
      %p147 = scmp.eq.s32.totalorder %s146, 0
      %s149 = sadd.s32 %s148, 1
      %s150 = scalar_select %p147, %s148, %s149
      %p153 = pneg %p147
      %p154 = scmp.eq.s32.totalorder %s18, 1
      %p155 = por %p153, %p154
      %p156 = scmp.ne.s32.totalorder %s148, %s151
      %p157 = scmp.eq.s32.totalorder %s18, 0
      %p158 = por %p156, %p157
      %p159 = scmp.ne.s32.totalorder %s148, %s151
      %p160 = scmp.eq.s32.totalorder %s23, 1
      %p161 = por %p159, %p160
      %p162 = scmp.ne.s32.totalorder %s151, %s152
      %p163 = scmp.eq.s32.totalorder %s23, 0
      %p164 = por %p162, %p163
      %p165 = scmp.ne.s32.totalorder %s151, %s152
      %p166 = scmp.eq.s32.totalorder %s24, 1
      %p167 = por %p165, %p166
      %p169 = scmp.ne.s32.totalorder %s152, %s168
      %p170 = scmp.eq.s32.totalorder %s24, 0
      %p171 = por %p169, %p170
      %p172 = scmp.le.s32.totalorder 1, %s18
      %p173 = scmp.lt.s32.totalorder %s18, 3
      %p174 = pnand %p172, %p173
      %p175 = pneg %p174
      // Predicated region
      $region9: #{tpu_custom_call.1} parent=5 // pred_check
        _
      $region10: #{tpu_custom_call.1} parent=5 // pred_check_branch
        %177 = sbr.rel (%p174) target = $region12
      $region11: #{tpu_custom_call.1} parent=5 // pred_region
        %s178 = ssub.s32 %s18, 1
        // Predicated region
        $region13: #{tpu_custom_call.1} parent=11 // pred_check
          %p179 = pneg %p117
        $region14: #{tpu_custom_call.1} parent=11 // pred_check_branch
          %181 = sbr.rel (%p179) target = $region16
        $region15: #{tpu_custom_call.1} parent=11 // pred_region
          %s183 = ssub.s32 512, 512
          %184 = vsyncadd [#allocation6], %s183
          %s185 = sshll.u32 [#allocation5], 4
          %s186 = int_to_ptr.vmem [resolvable:$true] %s185
          %191 = dma.hbm_to_vmem [thread:$0]  %s3, 512, %s186, [#allocation6], 128, 128, 8
        $region16: #{tpu_custom_call.1} parent=11 // pred_fallthru
          _
        // Predicated region
        $region17: #{tpu_custom_call.1} parent=11 // pred_check
          %p192 = pneg %p138
        $region18: #{tpu_custom_call.1} parent=11 // pred_check_branch
          %194 = sbr.rel (%p192) target = $region20
        $region19: #{tpu_custom_call.1} parent=11 // pred_region
          _
        $region20: #{tpu_custom_call.1} parent=11 // pred_fallthru
          _
      $region12: #{tpu_custom_call.1} parent=5 // pred_fallthru
        _
      %p195 = scmp.lt.s32.totalorder %s18, 2
      // Predicated region
      $region21: #{tpu_custom_call.1} parent=5 // pred_check
        %p196 = pneg %p195
      $region22: #{tpu_custom_call.1} parent=5 // pred_check_branch
        %198 = sbr.rel (%p196) target = $region24
      $region23: #{tpu_custom_call.1} parent=5 // pred_region
        // Predicated region
        $region25: #{tpu_custom_call.1} parent=23 // pred_check
          %p199 = pneg %p38
        $region26: #{tpu_custom_call.1} parent=23 // pred_check_branch
          %201 = sbr.rel (%p199) target = $region28
        $region27: #{tpu_custom_call.1} parent=23 // pred_region
          %p202 = scmp.lt.s32.totalorder %s18, 1
          %s203 = scalar_select %p202, %s18, 1
          %s204 = smul.addr %s203, 2
          %s205 = smul.addr %s204, 8
          %s206 = scalar_lea.vmem %s0, %s205
        $region28: #{tpu_custom_call.1} parent=23 // pred_fallthru
          _
        // Predicated region
        $region29: #{tpu_custom_call.1} parent=23 // pred_check
          %p207 = pneg %p64
        $region30: #{tpu_custom_call.1} parent=23 // pred_check_branch
          %209 = sbr.rel (%p207) target = $region32
        $region31: #{tpu_custom_call.1} parent=23 // pred_region
          %s210 = sand.u32 %s54, 1
          %s211 = scalar_lea.sflag [#allocation3], %s210
          %s212 = sand.u32 %s54, 1
          %s213 = smul.addr %s212, 16
          %s214 = scalar_lea.vmem [#allocation2], %s213
          %s216 = ssub.s32 256, 256
          %217 = vsyncadd %s211, %s216
          %s218 = smul.addr %s18, 2
          %s219 = smul.addr %s218, 128
          %s220 = scalar_lea.hbm %s1, %s219
          %s221 = sshll.u32 %s214, 4
          %s222 = int_to_ptr.vmem [resolvable:$true] %s221
          %227 = dma.hbm_to_vmem [thread:$0]  %s220, 256, %s222, %s211, 128, 128, 8
        $region32: #{tpu_custom_call.1} parent=23 // pred_fallthru
          _
        // Predicated region
        $region33: #{tpu_custom_call.1} parent=23 // pred_check
          %p228 = pneg %p90
        $region34: #{tpu_custom_call.1} parent=23 // pred_check_branch
          %230 = sbr.rel (%p228) target = $region36
        $region35: #{tpu_custom_call.1} parent=23 // pred_region
          %p231 = scmp.lt.s32.totalorder %s18, 1
          %s232 = scalar_select %p231, %s18, 1
          %s233 = smul.addr %s232, 2
          %s234 = smul.addr %s233, 8
          %s235 = scalar_lea.vmem %s2, %s234
        $region36: #{tpu_custom_call.1} parent=23 // pred_fallthru
          _
      $region24: #{tpu_custom_call.1} parent=5 // pred_fallthru
        _
      %p236 = scmp.le.s32.totalorder 1, %s18
      %p237 = scmp.lt.s32.totalorder %s18, 3
      %p238 = pnand %p236, %p237
      %p239 = pneg %p238
      // Predicated region
      $region37: #{tpu_custom_call.1} parent=5 // pred_check
        _
      $region38: #{tpu_custom_call.1} parent=5 // pred_check_branch
        %241 = sbr.rel (%p238) target = $region40
      $region39: #{tpu_custom_call.1} parent=5 // pred_region
        %s242 = ssub.s32 %s18, 1
        %s243 = sand.u32 %s57, 1
        %s244 = scalar_lea.sflag [#allocation3], %s243
        %s245 = sand.u32 %s57, 1
        %s246 = smul.addr %s245, 16
        %s247 = scalar_lea.vmem [#allocation2], %s246
        // Predicated region
        $region41: #{tpu_custom_call.1} parent=39 // pred_check
          %p248 = pneg %p70
        $region42: #{tpu_custom_call.1} parent=39 // pred_check_branch
          %250 = sbr.rel (%p248) target = $region44
        $region43: #{tpu_custom_call.1} parent=39 // pred_region
          %251 = dma.done %s244, 256
        $region44: #{tpu_custom_call.1} parent=39 // pred_fallthru
          _
        // Predicated region
        $region45: #{tpu_custom_call.1} parent=39 // pred_check
          %p252 = pneg %p117
        $region46: #{tpu_custom_call.1} parent=39 // pred_check_branch
          %254 = sbr.rel (%p252) target = $region48
        $region47: #{tpu_custom_call.1} parent=39 // pred_region
          %255 = dma.done [#allocation6], 512
        $region48: #{tpu_custom_call.1} parent=39 // pred_fallthru
          _
        %p256 = scmp.lt.s32.totalorder %s23, 1
        %s257 = scalar_select %p256, %s23, 1
        %s258 = smul.addr %s257, 2
        %s259 = smul.addr %s258, 8
        %s260 = scalar_lea.vmem %s0, %s259
        %p261 = pneg %p44
        %p262 = pneg %p41
        %s263 = sand.u32 %s57, 1
        %s264 = scalar_lea.sflag [#allocation3], %s263
        %s265 = sand.u32 %s57, 1
        %s266 = smul.addr %s265, 16
        %s267 = scalar_lea.vmem [#allocation2], %s266
        %p268 = pneg %p70
        %p269 = pneg %p67
        %p270 = scmp.lt.s32.totalorder %s23, 1
        %s271 = scalar_select %p270, %s23, 1
        %s272 = smul.addr %s271, 2
        %s273 = smul.addr %s272, 8
        %s274 = scalar_lea.vmem %s2, %s273
        %p275 = pneg %p96
        %p276 = pneg %p93
        %p277 = pneg %p117
        %p278 = pneg %p114
        %p279 = pneg %p138
        %p280 = pneg %p135
        %p281 = pneg %p164
        %p282 = pneg %p161
        %s283 = sand.u32 %s151, 1
        %s284 = scalar_lea.sflag [#allocation4], %s283
        %s285 = sand.u32 %s151, 1
        %s286 = smul.addr %s285, 16
        %s287 = scalar_lea.vmem [#allocation7], %s286
        %p288 = scmp.lt.s32.totalorder %s23, 1
        %s289 = scalar_select %p288, %s23, 1
        %s290 = smul.addr %s289, 2
        %s291 = smul.addr %s290, 8
        %s292 = scalar_lea.vmem %s0, %s291
        %p293 = scmp.lt.s32.totalorder %s23, 1
        %s294 = scalar_select %p293, %s23, 1
        %s295 = smul.addr %s294, 2
        %s296 = smul.addr %s295, 8
        %s297 = scalar_lea.vmem %s2, %s296
        %v298 = vld [vmem:[%s297] sm:$0xff]
        %v299 = vld [vmem:[%s297 + $0x8] sm:$0xff]
        %v300 = vld [vmem:[%s247] sm:$0xff]
        %v301 = vld [vmem:[%s247 + $0x8] sm:$0xff]
        %303 = vset.pattern.permute.xlu0 0
        %304 = vperm.xlu0 %303, %v298
        %v305 = vpop.permute.xlu0 %304
        %308 = vset.pattern.permute.xlu0 0
        %309 = vperm.xlu0 %308, %v299
        %v310 = vpop.permute.xlu0 %309
        %v312 = vmul.f32 %v300, %v305
        %v313 = vmul.f32 %v301, %v310
        %v314 = vld [vmem:[%s292] sm:$0xff]
        %v315 = vld [vmem:[%s292 + $0x8] sm:$0xff]
        %vm316 = vcmask 130048
        %v318 = vsel %vm316, %v312, 0
        %v321 = vsel %vm316, %v313, 0
        %323 = vmatprep.subr.mxu0 0.0
        %324 = vmatpush1.msra.mxu0 0.0
        %325 = vmatprep.subr.mxu0 0.0
        %326 = vmatpush1.msra.mxu0 0.0
        %327 = vmatprep.subr.mxu0 0.0
        %328 = vmatpush1.msra.mxu0 0.0
        %329 = vmatprep.subr.mxu0 0.0
        %330 = vmatpush1.msra.mxu0 0.0
        %331 = vmatprep.subr.mxu0 0.0
        %332 = vmatpush1.msra.mxu0 0.0
        %333 = vmatprep.subr.mxu0 0.0
        %334 = vmatpush1.msra.mxu0 0.0
        %335 = vmatprep.subr.mxu0 0.0
        %336 = vmatpush1.msra.mxu0 0.0
        %337 = vmatprep.subr.mxu0 0.0
        %338 = vmatpush1.msra.mxu0 0.0
        %339 = vmatprep.subr.mxu0 0.0
        %340 = vmatpush1.msra.mxu0 0.0
        %341 = vmatprep.subr.mxu0 0.0
        %342 = vmatpush1.msra.mxu0 0.0
        %343 = vmatprep.subr.mxu0 0.0
        %344 = vmatpush1.msra.mxu0 0.0
        %345 = vmatprep.subr.mxu0 0.0
        %346 = vmatpush1.msra.mxu0 0.0
        %347 = vmatprep.subr.mxu0 0.0
        %348 = vmatpush1.msra.mxu0 0.0
        %349 = vmatprep.subr.mxu0 0.0
        %350 = vmatpush1.msra.mxu0 0.0
        %351 = vmatprep.subr.mxu0 0.0
        %352 = vmatpush1.msra.mxu0 %v315
        %353 = vmatprep.subr.mxu0 0.0
        %354 = vmatpush1.msra.mxu0 %v314
        %355 = vmatprep.subr.mxu0 0.0
        %356 = vmatpush2.msra.mxu0 0.0
        %357 = vmatprep.subr.mxu0 0.0
        %358 = vmatpush2.msra.mxu0 0.0
        %359 = vmatprep.subr.mxu0 0.0
        %360 = vmatpush2.msra.mxu0 0.0
        %361 = vmatprep.subr.mxu0 0.0
        %362 = vmatpush2.msra.mxu0 0.0
        %363 = vmatprep.subr.mxu0 0.0
        %364 = vmatpush2.msra.mxu0 0.0
        %365 = vmatprep.subr.mxu0 0.0
        %366 = vmatpush2.msra.mxu0 0.0
        %367 = vmatprep.subr.mxu0 0.0
        %368 = vmatpush2.msra.mxu0 0.0
        %369 = vmatprep.subr.mxu0 0.0
        %370 = vmatpush2.msra.mxu0 0.0
        %371 = vmatprep.subr.mxu0 0.0
        %372 = vmatpush2.msra.mxu0 0.0
        %373 = vmatprep.subr.mxu0 0.0
        %374 = vmatpush2.msra.mxu0 0.0
        %375 = vmatprep.subr.mxu0 0.0
        %376 = vmatpush2.msra.mxu0 0.0
        %377 = vmatprep.subr.mxu0 0.0
        %378 = vmatpush2.msra.mxu0 0.0
        %379 = vmatprep.subr.mxu0 0.0
        %380 = vmatpush2.msra.mxu0 0.0
        %381 = vmatprep.subr.mxu0 0.0
        %382 = vmatpush2.msra.mxu0 0.0
        %383 = vmatprep.subr.mxu0 0.0
        %384 = vmatpush2.msra.mxu0 0.0
        %385 = vmatprep.subr.mxu0 0.0
        %386 = vmatpush2.msra.mxu0 0.0
        %387 = vmatprep.mubr.f32.mxu0 0.0
        %388 = vmatmul.mubr.f32.gmra.mxu0 %v318
        %v389 = vpop.f32.mrf.mxu0
        %v390 = vadd.f32 0.0, %v389
        %v391 = vpop.f32.mrf.mxu0
        %392 = vmatprep.mubr.f32.mxu0 0.0
        %393 = vmatmul.mubr.f32.gmra.mxu0 %v321
        %v394 = vpop.f32.mrf.mxu0
        %v395 = vadd.f32 0.0, %v394
        %v396 = vpop.f32.mrf.mxu0
        %397 = vdwg.mxu0
        %v398 = vld [vmem:[#allocation5] sm:$0xff]
        %v399 = vld [vmem:[#allocation5 + $0x8] sm:$0xff]
        %v400 = vld [vmem:[#allocation5 + $0x10] sm:$0xff]
        %v401 = vld [vmem:[#allocation5 + $0x18] sm:$0xff]
        %vm402 = vcmask 261120
        %v404 = vsel %vm402, %v390, 0
        %v407 = vsel %vm402, %v395, 0
        %409 = vmatprep.subr.mxu0 0.0
        %410 = vmatpush1.msra.mxu0 0.0
        %411 = vmatprep.subr.mxu0 0.0
        %412 = vmatpush1.msra.mxu0 0.0
        %413 = vmatprep.subr.mxu0 0.0
        %414 = vmatpush1.msra.mxu0 0.0
        %415 = vmatprep.subr.mxu0 0.0
        %416 = vmatpush1.msra.mxu0 0.0
        %417 = vmatprep.subr.mxu0 0.0
        %418 = vmatpush1.msra.mxu0 0.0
        %419 = vmatprep.subr.mxu0 0.0
        %420 = vmatpush1.msra.mxu0 0.0
        %421 = vmatprep.subr.mxu0 0.0
        %422 = vmatpush1.msra.mxu0 0.0
        %423 = vmatprep.subr.mxu0 0.0
        %424 = vmatpush1.msra.mxu0 0.0
        %425 = vmatprep.subr.mxu0 0.0
        %426 = vmatpush1.msra.mxu0 0.0
        %427 = vmatprep.subr.mxu0 0.0
        %428 = vmatpush1.msra.mxu0 0.0
        %429 = vmatprep.subr.mxu0 0.0
        %430 = vmatpush1.msra.mxu0 0.0
        %431 = vmatprep.subr.mxu0 0.0
        %432 = vmatpush1.msra.mxu0 0.0
        %433 = vmatprep.subr.mxu0 0.0
        %434 = vmatpush1.msra.mxu0 %v401
        %435 = vmatprep.subr.mxu0 0.0
        %436 = vmatpush1.msra.mxu0 %v400
        %437 = vmatprep.subr.mxu0 0.0
        %438 = vmatpush1.msra.mxu0 %v399
        %439 = vmatprep.subr.mxu0 0.0
        %440 = vmatpush1.msra.mxu0 %v398
        %441 = vmatprep.subr.mxu0 0.0
        %442 = vmatpush2.msra.mxu0 0.0
        %443 = vmatprep.subr.mxu0 0.0
        %444 = vmatpush2.msra.mxu0 0.0
        %445 = vmatprep.subr.mxu0 0.0
        %446 = vmatpush2.msra.mxu0 0.0
        %447 = vmatprep.subr.mxu0 0.0
        %448 = vmatpush2.msra.mxu0 0.0
        %449 = vmatprep.subr.mxu0 0.0
        %450 = vmatpush2.msra.mxu0 0.0
        %451 = vmatprep.subr.mxu0 0.0
        %452 = vmatpush2.msra.mxu0 0.0
        %453 = vmatprep.subr.mxu0 0.0
        %454 = vmatpush2.msra.mxu0 0.0
        %455 = vmatprep.subr.mxu0 0.0
        %456 = vmatpush2.msra.mxu0 0.0
        %457 = vmatprep.subr.mxu0 0.0
        %458 = vmatpush2.msra.mxu0 0.0
        %459 = vmatprep.subr.mxu0 0.0
        %460 = vmatpush2.msra.mxu0 0.0
        %461 = vmatprep.subr.mxu0 0.0
        %462 = vmatpush2.msra.mxu0 0.0
        %463 = vmatprep.subr.mxu0 0.0
        %464 = vmatpush2.msra.mxu0 0.0
        %465 = vmatprep.subr.mxu0 0.0
        %466 = vmatpush2.msra.mxu0 0.0
        %467 = vmatprep.subr.mxu0 0.0
        %468 = vmatpush2.msra.mxu0 0.0
        %469 = vmatprep.subr.mxu0 0.0
        %470 = vmatpush2.msra.mxu0 0.0
        %471 = vmatprep.subr.mxu0 0.0
        %472 = vmatpush2.msra.mxu0 0.0
        %473 = vmatprep.mubr.f32.mxu0 0.0
        %474 = vmatmul.mubr.f32.gmra.mxu0 %v404
        %v475 = vpop.f32.mrf.mxu0
        %v476 = vadd.f32 0.0, %v475
        %v477 = vpop.f32.mrf.mxu0
        %478 = vmatprep.mubr.f32.mxu0 0.0
        %479 = vmatmul.mubr.f32.gmra.mxu0 %v407
        %v480 = vpop.f32.mrf.mxu0
        %v481 = vadd.f32 0.0, %v480
        %v482 = vpop.f32.mrf.mxu0
        %483 = vdwg.mxu0
        %v484 = vld [vmem:[%s4] sm:$0x1]
        %v486 = vlaneseq
        %v487 = vshrl.u32 %v486, 7
        %v488 = vsub.s32 0, %v487
        %v489 = vrot.slane %v484, %v488
        %v491 = vadd.f32 %v476, %v489
        %v492 = vadd.f32 %v481, %v489
        %493 = vst [vmem:[%s287] sm:$0xff] %v491
        %494 = vst [vmem:[%s287 + $0x8] sm:$0xff] %v492
        %s495 = sand.u32 %s151, 1
        %s496 = scalar_lea.sflag [#allocation4], %s495
        %s497 = sand.u32 %s151, 1
        %s498 = smul.addr %s497, 16
        %s499 = scalar_lea.vmem [#allocation7], %s498
        // Predicated region
        $region49: #{tpu_custom_call.1} parent=39 // pred_check
          %p500 = pneg %p161
        $region50: #{tpu_custom_call.1} parent=39 // pred_check_branch
          %502 = sbr.rel (%p500) target = $region52
        $region51: #{tpu_custom_call.1} parent=39 // pred_region
          %s504 = ssub.s32 256, 256
          %505 = vsyncadd %s496, %s504
          %s506 = smul.addr %s23, 2
          %s507 = smul.addr %s506, 128
          %s508 = scalar_lea.hbm %s5, %s507
          %s509 = sshll.u32 %s499, 4
          %s510 = int_to_ptr.vmem [resolvable:$true] %s509
          %515 = dma.vmem_to_hbm [thread:$0]  %s510, 256, %s508, %s496, 128, 128, 8
        $region52: #{tpu_custom_call.1} parent=39 // pred_fallthru
          _
      $region40: #{tpu_custom_call.1} parent=5 // pred_fallthru
        _
      %p516 = scmp.le.s32.totalorder 2, %s18
      // Predicated region
      $region53: #{tpu_custom_call.1} parent=5 // pred_check
        %p517 = pneg %p516
      $region54: #{tpu_custom_call.1} parent=5 // pred_check_branch
        %519 = sbr.rel (%p517) target = $region56
      $region55: #{tpu_custom_call.1} parent=5 // pred_region
        %s520 = ssub.s32 %s18, 2
        // Predicated region
        $region57: #{tpu_custom_call.1} parent=55 // pred_check
          %p521 = pneg %p167
        $region58: #{tpu_custom_call.1} parent=55 // pred_check_branch
          %523 = sbr.rel (%p521) target = $region60
        $region59: #{tpu_custom_call.1} parent=55 // pred_region
          %s524 = sand.u32 %s152, 1
          %s525 = scalar_lea.sflag [#allocation4], %s524
          %s526 = sand.u32 %s152, 1
          %s527 = smul.addr %s526, 16
          %s528 = scalar_lea.vmem [#allocation7], %s527
          %529 = dma.done %s525, 256
        $region60: #{tpu_custom_call.1} parent=55 // pred_fallthru
          _
      $region56: #{tpu_custom_call.1} parent=5 // pred_fallthru
        _
    $region6: #{tpu_custom_call.1} parent=1 // loop_footer
      %s22 = sadd.s32 1, %s18
    $region7: #{tpu_custom_call.1} parent=1 // loop_footer_branch
      %17 = sbr.rel target = $region3
    $region8: #{tpu_custom_call.1} parent=1 // loop_exit
      _
    %530 = vsyncpa [#allocation3], 1
    %s531 = scalar_lea.sflag [#allocation3], 1
    %532 = vsyncpa %s531, 1
    %533 = vsyncpa [#allocation6], 1
    %534 = vsyncpa [#allocation4], 1
    %s535 = scalar_lea.sflag [#allocation4], 1
    %536 = vsyncpa %s535, 1

</llo_original>
